<compile_context>
chip_gen: v7x
topology: tpu7x:2x2x1
jax: 0.10.0
libtpu: 0.0.40
codegen_flags: <defaults>
</compile_context>

<pallas_src>
import jax
import jax.numpy as jnp
from jax import lax
from jax.experimental import pallas as pl
from jax.experimental.pallas import tpu as pltpu


_SUBLANE = 8


def _round_up(x, m):
    return ((x + m - 1) // m) * m


def _fused_gather_linear_kernel(ids_ref, table_ref, wt_ref, o_ref):
    """One row tile: gather rows of the VMEM-resident embedding table via a
    one-hot MXU matmul, then project with the pre-transposed fc weight."""
    ids = ids_ref[...]                                   # (TM, 1) int32
    tm = ids.shape[0]
    vocab = table_ref.shape[0]
    one_hot = (ids == lax.broadcasted_iota(jnp.int32, (tm, vocab), 1)).astype(
        jnp.float32
    )                                                    # (TM, vocab)
    x = jnp.dot(one_hot, table_ref[...],
                preferred_element_type=jnp.float32)      # (TM, D)
    o_ref[...] = jnp.dot(x, wt_ref[...],
                         preferred_element_type=jnp.float32).astype(o_ref.dtype)


def _linear_kernel(x_ref, wt_ref, o_ref):
    # X tile (TM, D) @ W^T (D, latent_M) -> (TM, latent_M)
    o_ref[...] = jnp.dot(x_ref[...], wt_ref[...],
                         preferred_element_type=jnp.float32).astype(o_ref.dtype)


def _row_tiling(n, row_tile):
    tm = min(row_tile, _round_up(n, _SUBLANE))
    tm = _round_up(tm, _SUBLANE)
    # Keep >= 2 row tiles when there is enough work so ("parallel",) sharding
    # gives both v7x TensorCores a tile (harmless elsewhere).
    if pl.cdiv(n, tm) == 1 and n > _SUBLANE:
        tm = _round_up(pl.cdiv(n, 2), _SUBLANE)
    n_pad = _round_up(n, tm)
    return tm, n_pad


def sememe_predict_forward(word_ids, embed_table, fc_weight, *, row_tile=4096,
                           fuse_gather=None):
    """Forward pass of SememePredictModel (no p_h / sememe_embed branches).

    word_ids:    (B, T) integer token ids
    embed_table: (vocab, embed_dim) float32 pretrained word embeddings
    fc_weight:   (latent_M, embed_dim) float32 (torch nn.Linear weight layout)

    returns: (B*T, latent_M) float32 logits
             == F.linear(word_embed(word), fc.weight).view(-1, latent_M)
    """
    vocab, D = embed_table.shape
    latent_M = fc_weight.shape[0]
    B, T = word_ids.shape
    N = B * T

    # Pre-transpose the tiny, grid-resident weight once: (D, latent_M).
    wt = fc_weight.astype(jnp.float32).T

    if fuse_gather is None:
        # Fuse only when the table (and the per-tile one-hot) comfortably fits VMEM.
        fuse_gather = vocab <= 1024

    tm, n_pad = _row_tiling(N, row_tile)
    grid = (n_pad // tm,)
    itemsize = 4

    if fuse_gather:
        ids = word_ids.reshape(N, 1).astype(jnp.int32)
        if n_pad != N:
            ids = jnp.pad(ids, ((0, n_pad - N), (0, 0)))   # pad ids -> gather row 0; sliced off
        table = embed_table.astype(jnp.float32)

        # Double-buffered ids/out tiles + resident table & weight
        # + in-kernel one-hot and gathered-x intermediates, 25% headroom.
        work = 2 * (tm * 1 + tm * latent_M) * itemsize
        work += (vocab * D + D * latent_M) * itemsize
        work += (tm * vocab + tm * D) * itemsize
        vmem_limit = min(40 * 1024 * 1024,
                         max(16 * 1024 * 1024, int(work * 1.25)))

        out = pl.pallas_call(
            _fused_gather_linear_kernel,
            out_shape=jax.ShapeDtypeStruct((n_pad, latent_M), jnp.float32),
            grid_spec=pltpu.PrefetchScalarGridSpec(
                num_scalar_prefetch=0,
                grid=grid,
                in_specs=[
                    pl.BlockSpec((tm, 1), lambda i: (i, 0)),         # word-id tile
                    pl.BlockSpec((vocab, D), lambda i: (0, 0)),      # resident embed table
                    pl.BlockSpec((D, latent_M), lambda i: (0, 0)),   # resident W^T
                ],
                out_specs=pl.BlockSpec((tm, latent_M), lambda i: (i, 0)),
            ),
            compiler_params=pltpu.CompilerParams(
                dimension_semantics=("parallel",),
                vmem_limit_bytes=vmem_limit,
            ),
        )(ids, table, wt)
    else:
        # Large-vocab fallback: embedding lookup stays in plain JAX (glue).
        x2d = embed_table[word_ids].astype(jnp.float32).reshape(N, D)
        if n_pad != N:
            x2d = jnp.pad(x2d, ((0, n_pad - N), (0, 0)))

        work = 2 * (tm * D + tm * latent_M) * itemsize + D * latent_M * itemsize
        vmem_limit = min(40 * 1024 * 1024,
                         max(16 * 1024 * 1024, int(work * 1.25)))

        out = pl.pallas_call(
            _linear_kernel,
            out_shape=jax.ShapeDtypeStruct((n_pad, latent_M), jnp.float32),
            grid_spec=pltpu.PrefetchScalarGridSpec(
                num_scalar_prefetch=0,
                grid=grid,
                in_specs=[
                    pl.BlockSpec((tm, D), lambda i: (i, 0)),
                    pl.BlockSpec((D, latent_M), lambda i: (0, 0)),
                ],
                out_specs=pl.BlockSpec((tm, latent_M), lambda i: (i, 0)),
            ),
            compiler_params=pltpu.CompilerParams(
                dimension_semantics=("parallel",),
                vmem_limit_bytes=vmem_limit,
            ),
        )(x2d, wt)

    return out[:N] if n_pad != N else out


if __name__ == "__main__":
    # Small, deterministic synthetic setup consistent with the module's __init__:
    #   args.embed_dim = 32, args.latent_M = 16, vocab = 64, batch = 2, seq = 8
    key = jax.random.PRNGKey(0)
    k_emb, k_fc, k_ids = jax.random.split(key, 3)

    vocab, embed_dim, latent_M = 64, 32, 16
    B, T = 2, 8

    # Pretrained word embedding table (synthetic).
    embed_table = jax.random.normal(k_emb, (vocab, embed_dim), dtype=jnp.float32)

    # fc = Linear(embed_dim, latent_M, bias=False); weight.uniform_(-0.1, 0.1)
    fc_weight = jax.random.uniform(
        k_fc, (latent_M, embed_dim), minval=-0.1, maxval=0.1, dtype=jnp.float32
    )

    # Input word indices.
    word_ids = jax.random.randint(k_ids, (B, T), 0, vocab, dtype=jnp.int32)

    # Fused (in-kernel gather) path.
    logits = sememe_predict_forward(word_ids, embed_table, fc_weight)
    logits = jax.block_until_ready(logits)

    # Non-fused fallback path (plain-JAX gather + linear kernel).
    logits_nf = sememe_predict_forward(word_ids, embed_table, fc_weight,
                                       fuse_gather=False)
    logits_nf = jax.block_until_ready(logits_nf)

    # Reference in plain JAX (same math as F.linear(x, W).view(-1, latent_M)).
    ref = embed_table[word_ids].reshape(B * T, embed_dim) @ fc_weight.T
    assert logits.shape == (B * T, latent_M)
    assert logits_nf.shape == (B * T, latent_M)
    assert jnp.allclose(logits, ref, atol=1e-5, rtol=1e-5)
    assert jnp.allclose(logits_nf, ref, atol=1e-5, rtol=1e-5)

    print("KERNEL_OK")
</pallas_src>

<mosaic_0001>
module attributes {stable_mosaic.version = 11 : i64} {
  func.func @_fused_gather_linear_kernel(%arg0: i32, %arg1: memref<8x1xi32, #tpu.memory_space<vmem>>, %arg2: memref<64x32xf32, #tpu.memory_space<vmem>>, %arg3: memref<32x16xf32, #tpu.memory_space<vmem>>, %arg4: memref<8x16xf32, #tpu.memory_space<vmem>>) attributes {dimension_semantics = [#tpu.dimension_semantics<parallel>], iteration_bounds = array<i64: 2>, scalar_prefetch = 0 : i64, scratch_operands = 0 : i64, tpu.core_type = #tpu.core_type<tc>, window_params = [{transform_indices = @transform_0, window_bounds = array<i64: 8, 1>}, {pipeline_mode = #tpu.pipeline_mode<synchronous>, transform_indices = @transform_1, window_bounds = array<i64: 64, 32>}, {pipeline_mode = #tpu.pipeline_mode<synchronous>, transform_indices = @transform_2, window_bounds = array<i64: 32, 16>}, {transform_indices = @transform_3, window_bounds = array<i64: 8, 16>}]} {
    %c0 = arith.constant 0 : index
    %c0_0 = arith.constant 0 : index
    %0 = vector.load %arg1[%c0, %c0_0] : memref<8x1xi32, #tpu.memory_space<vmem>>, vector<8x1xi32>
    %1 = tpu.iota {dimensions = array<i32: 1>} : vector<8x64xi32>
    %2 = vector.broadcast %0 : vector<8x1xi32> to vector<8x64xi32>
    %3 = arith.cmpi eq, %2, %1 : vector<8x64xi32>
    %4 = arith.extui %3 : vector<8x64xi1> to vector<8x64xi32>
    %5 = arith.sitofp %4 : vector<8x64xi32> to vector<8x64xf32>
    %c0_1 = arith.constant 0 : index
    %c0_2 = arith.constant 0 : index
    %6 = vector.load %arg2[%c0_1, %c0_2] : memref<64x32xf32, #tpu.memory_space<vmem>>, vector<64x32xf32>
    %cst = arith.constant dense<0.000000e+00> : vector<8x32xf32>
    %7 = tpu.matmul %5, %6, %cst {dimension_numbers = #tpu.dot_dimension_numbers<[1], [0], [0], [1], [0, 0, 1, 1], [], []>} : vector<8x64xf32>, vector<64x32xf32>, vector<8x32xf32> -> vector<8x32xf32>
    %c0_3 = arith.constant 0 : index
    %c0_4 = arith.constant 0 : index
    %8 = vector.load %arg3[%c0_3, %c0_4] : memref<32x16xf32, #tpu.memory_space<vmem>>, vector<32x16xf32>
    %cst_5 = arith.constant dense<0.000000e+00> : vector<8x16xf32>
    %9 = tpu.matmul %7, %8, %cst_5 {dimension_numbers = #tpu.dot_dimension_numbers<[1], [0], [0], [1], [0, 0, 1, 1], [], []>} : vector<8x32xf32>, vector<32x16xf32>, vector<8x16xf32> -> vector<8x16xf32>
    %c0_6 = arith.constant 0 : index
    %c0_7 = arith.constant 0 : index
    %10 = vector.load %arg4[%c0_6, %c0_7] : memref<8x16xf32, #tpu.memory_space<vmem>>, vector<8x16xf32>
    tpu.vector_store %arg4[%c0_6, %c0_7], %9 {strides = array<i32>} : memref<8x16xf32, #tpu.memory_space<vmem>>, vector<8x16xf32>,
    return
  }
  func.func @transform_0(%arg0: i32) -> (i32, i32) {
    %c0_i32 = arith.constant 0 : i32
    %c0_i32_0 = arith.constant 0 : i32
    return %arg0, %c0_i32 : i32, i32
  }
  func.func @transform_1(%arg0: i32) -> (i32, i32) {
    %c0_i32 = arith.constant 0 : i32
    %c0_i32_0 = arith.constant 0 : i32
    %c0_i32_1 = arith.constant 0 : i32
    return %c0_i32, %c0_i32_0 : i32, i32
  }
  func.func @transform_2(%arg0: i32) -> (i32, i32) {
    %c0_i32 = arith.constant 0 : i32
    %c0_i32_0 = arith.constant 0 : i32
    %c0_i32_1 = arith.constant 0 : i32
    return %c0_i32, %c0_i32_0 : i32, i32
  }
  func.func @transform_3(%arg0: i32) -> (i32, i32) {
    %c0_i32 = arith.constant 0 : i32
    %c0_i32_0 = arith.constant 0 : i32
    return %arg0, %c0_i32 : i32, i32
  }
}

</mosaic_0001>

<llo_original>
// kernel: tpu_custom_call.1
$region0: #{tpu_custom_call.1}
  #allocation0 [shape = 'u32[]', space=smem, size = 0x4, offset = 0x4, fixed_abs, tag = 'smem constant byte address 0x4 - core index']
  #allocation1 [shape = 'u32[144,128]{1,0:T(1,128)}', space=vmem, size = 0x12000, scoped, tag = 'internal scratch']
  %s0 = inlined_call_operand.vmem [shape: s32[16,1], index: 0, kind: input, shape index: {}]
  %s1 = inlined_call_operand.vmem [shape: f32[64,32], index: 1, kind: input, shape index: {}]
  %s2 = inlined_call_operand.vmem [shape: f32[32,16], index: 2, kind: input, shape index: {}]
  %s3 = inlined_call_operand.hbm [shape: f32[16,16], index: 3, kind: output, shape index: {}]
  %s4 = sld [smem:[#allocation0]]
  $region45: #{tpu_custom_call.1} parent=0
    _
  %s6 = ssub.s32 1, %s4
  %s7 = scalar_select 0, %s6, %s4
  $region1: #{tpu_custom_call.1} parent=0
    #allocation2 [shape = 'u8[8192]{0}', space=vmem, size = 0x2000, scoped, tag = 'output window, operand 0']
    #allocation3 [shape = 's32[2]{0}', space=sflag, size = 0x8, scoped, tag = 'scoped memory for tpu_custom_call.1']
    %8 = vsyncpa [#allocation3], 0
    %s9 = scalar_lea.sflag [#allocation3], 1
    %10 = vsyncpa %s9, 0
    loop: start=0, step=1, limit=4
    $region2: #{tpu_custom_call.1} parent=1 // loop_pre_header
      _
    $region3: #{tpu_custom_call.1} parent=1 // loop_header
      %s12 = sphi 0, %s16
      %p13 = scmp.ge.s32.totalorder %s12, 4
      %s22 = sphi 0, %s24
      %s25 = sphi 0, %s22
      %s26 = sphi 0, %s25
      %s42 = sphi 0, %s26
      %s46 = sphi 0, %s46
      %s48 = sphi 0, %s46
      %s49 = sphi 0, %s48
      %s63 = sphi 0, %s49
      %s67 = sphi 0, %s67
      %s69 = sphi 0, %s67
      %s70 = sphi 0, %s69
      %s84 = sphi 0, %s70
      %s90 = sphi 0, %s92
      %s93 = sphi 0, %s90
      %s94 = sphi 0, %s93
      %s110 = sphi 0, %s94
    $region4: #{tpu_custom_call.1} parent=1 // loop_header_branch
      %15 = sbr.rel (%p13) target = $region8
    $region5: #{tpu_custom_call.1} parent=1 // loop_body
      %s17 = ssub.s32 %s12, 1
      %s18 = ssub.s32 %s12, 2
      %s19 = sadd.s32 %s12, 1
      %s20 = ssub.s32 %s12, %s19
      %p21 = scmp.eq.s32.totalorder %s20, 0
      %s23 = sadd.s32 %s22, 1
      %s24 = scalar_select %p21, %s22, %s23
      %p27 = pneg %p21
      %p28 = scmp.eq.s32.totalorder %s12, 1
      %p29 = por %p27, %p28
      %p30 = scmp.ne.s32.totalorder %s22, %s25
      %p31 = scmp.eq.s32.totalorder %s12, 0
      %p32 = por %p30, %p31
      %p33 = scmp.ne.s32.totalorder %s22, %s25
      %p34 = scmp.eq.s32.totalorder %s17, 1
      %p35 = por %p33, %p34
      %p36 = scmp.ne.s32.totalorder %s25, %s26
      %p37 = scmp.eq.s32.totalorder %s17, 0
      %p38 = por %p36, %p37
      %p39 = scmp.ne.s32.totalorder %s25, %s26
      %p40 = scmp.eq.s32.totalorder %s18, 1
      %p41 = por %p39, %p40
      %p43 = scmp.ne.s32.totalorder %s26, %s42
      %p44 = scmp.eq.s32.totalorder %s18, 0
      %p45 = por %p43, %p44
      %s47 = sadd.s32 %s46, 1
      %p50 = scmp.eq.s32.totalorder %s12, 1
      %p51 = scmp.ne.s32.totalorder %s46, %s48
      %p52 = scmp.eq.s32.totalorder %s12, 0
      %p53 = por %p51, %p52
      %p54 = scmp.ne.s32.totalorder %s46, %s48
      %p55 = scmp.eq.s32.totalorder %s17, 1
      %p56 = por %p54, %p55
      %p57 = scmp.ne.s32.totalorder %s48, %s49
      %p58 = scmp.eq.s32.totalorder %s17, 0
      %p59 = por %p57, %p58
      %p60 = scmp.ne.s32.totalorder %s48, %s49
      %p61 = scmp.eq.s32.totalorder %s18, 1
      %p62 = por %p60, %p61
      %p64 = scmp.ne.s32.totalorder %s49, %s63
      %p65 = scmp.eq.s32.totalorder %s18, 0
      %p66 = por %p64, %p65
      %s68 = sadd.s32 %s67, 1
      %p71 = scmp.eq.s32.totalorder %s12, 1
      %p72 = scmp.ne.s32.totalorder %s67, %s69
      %p73 = scmp.eq.s32.totalorder %s12, 0
      %p74 = por %p72, %p73
      %p75 = scmp.ne.s32.totalorder %s67, %s69
      %p76 = scmp.eq.s32.totalorder %s17, 1
      %p77 = por %p75, %p76
      %p78 = scmp.ne.s32.totalorder %s69, %s70
      %p79 = scmp.eq.s32.totalorder %s17, 0
      %p80 = por %p78, %p79
      %p81 = scmp.ne.s32.totalorder %s69, %s70
      %p82 = scmp.eq.s32.totalorder %s18, 1
      %p83 = por %p81, %p82
      %p85 = scmp.ne.s32.totalorder %s70, %s84
      %p86 = scmp.eq.s32.totalorder %s18, 0
      %p87 = por %p85, %p86
      %s88 = ssub.s32 %s12, %s19
      %p89 = scmp.eq.s32.totalorder %s88, 0
      %s91 = sadd.s32 %s90, 1
      %s92 = scalar_select %p89, %s90, %s91
      %p95 = pneg %p89
      %p96 = scmp.eq.s32.totalorder %s12, 1
      %p97 = por %p95, %p96
      %p98 = scmp.ne.s32.totalorder %s90, %s93
      %p99 = scmp.eq.s32.totalorder %s12, 0
      %p100 = por %p98, %p99
      %p101 = scmp.ne.s32.totalorder %s90, %s93
      %p102 = scmp.eq.s32.totalorder %s17, 1
      %p103 = por %p101, %p102
      %p104 = scmp.ne.s32.totalorder %s93, %s94
      %p105 = scmp.eq.s32.totalorder %s17, 0
      %p106 = por %p104, %p105
      %p107 = scmp.ne.s32.totalorder %s93, %s94
      %p108 = scmp.eq.s32.totalorder %s18, 1
      %p109 = por %p107, %p108
      %p111 = scmp.ne.s32.totalorder %s94, %s110
      %p112 = scmp.eq.s32.totalorder %s18, 0
      %p113 = por %p111, %p112
      %p114 = scmp.le.s32.totalorder 1, %s12
      %p115 = scmp.lt.s32.totalorder %s12, 3
      %p116 = pnand %p114, %p115
      %p117 = pneg %p116
      // Predicated region
      $region9: #{tpu_custom_call.1} parent=5 // pred_check
        _
      $region10: #{tpu_custom_call.1} parent=5 // pred_check_branch
        %119 = sbr.rel (%p116) target = $region12
      $region11: #{tpu_custom_call.1} parent=5 // pred_region
        %s120 = ssub.s32 %s12, 1
        // Predicated region
        $region13: #{tpu_custom_call.1} parent=11 // pred_check
          %p121 = pneg %p59
        $region14: #{tpu_custom_call.1} parent=11 // pred_check_branch
          %123 = sbr.rel (%p121) target = $region16
        $region15: #{tpu_custom_call.1} parent=11 // pred_region
          _
        $region16: #{tpu_custom_call.1} parent=11 // pred_fallthru
          _
        // Predicated region
        $region17: #{tpu_custom_call.1} parent=11 // pred_check
          %p124 = pneg %p80
        $region18: #{tpu_custom_call.1} parent=11 // pred_check_branch
          %126 = sbr.rel (%p124) target = $region20
        $region19: #{tpu_custom_call.1} parent=11 // pred_region
          _
        $region20: #{tpu_custom_call.1} parent=11 // pred_fallthru
          _
      $region12: #{tpu_custom_call.1} parent=5 // pred_fallthru
        _
      %p127 = scmp.lt.s32.totalorder %s12, 2
      // Predicated region
      $region21: #{tpu_custom_call.1} parent=5 // pred_check
        %p128 = pneg %p127
      $region22: #{tpu_custom_call.1} parent=5 // pred_check_branch
        %130 = sbr.rel (%p128) target = $region24
      $region23: #{tpu_custom_call.1} parent=5 // pred_region
        // Predicated region
        $region25: #{tpu_custom_call.1} parent=23 // pred_check
          %p131 = pneg %p32
        $region26: #{tpu_custom_call.1} parent=23 // pred_check_branch
          %133 = sbr.rel (%p131) target = $region28
        $region27: #{tpu_custom_call.1} parent=23 // pred_region
          %p134 = scmp.lt.s32.totalorder %s12, 1
          %s135 = scalar_select %p134, %s12, 1
          %s136 = smul.addr %s135, 8
          %s137 = scalar_lea.vmem %s0, %s136
        $region28: #{tpu_custom_call.1} parent=23 // pred_fallthru
          _
      $region24: #{tpu_custom_call.1} parent=5 // pred_fallthru
        _
      %p138 = scmp.le.s32.totalorder 1, %s12
      %p139 = scmp.lt.s32.totalorder %s12, 3
      %p140 = pnand %p138, %p139
      %p141 = pneg %p140
      // Predicated region
      $region29: #{tpu_custom_call.1} parent=5 // pred_check
        _
      $region30: #{tpu_custom_call.1} parent=5 // pred_check_branch
        %143 = sbr.rel (%p140) target = $region32
      $region31: #{tpu_custom_call.1} parent=5 // pred_region
        %s144 = ssub.s32 %s12, 1
        %p145 = scmp.lt.s32.totalorder %s17, 1
        %s146 = scalar_select %p145, %s17, 1
        %s147 = smul.addr %s146, 8
        %s148 = scalar_lea.vmem %s0, %s147
        %p149 = pneg %p38
        %p150 = pneg %p35
        %p151 = pneg %p59
        %p152 = pneg %p56
        %p153 = pneg %p80
        %p154 = pneg %p77
        %p155 = pneg %p106
        %p156 = pneg %p103
        %s157 = sand.u32 %s93, 1
        %s158 = scalar_lea.sflag [#allocation3], %s157
        %s159 = sand.u32 %s93, 1
        %s160 = smul.addr %s159, 8
        %s161 = scalar_lea.vmem [#allocation2], %s160
        %p162 = scmp.lt.s32.totalorder %s17, 1
        %s163 = scalar_select %p162, %s17, 1
        %s164 = smul.addr %s163, 8
        %s165 = scalar_lea.vmem %s0, %s164
        %v166 = vld [vmem:[%s165] sm:$0xff]
        %v167 = vlaneseq
        %v168 = vand.u32 %v167, 127
        %169 = vset.pattern.permute.xlu0 0
        %170 = vperm.xlu0 %169, %v166
        %v171 = vpop.permute.xlu0 %170
        %vm172 = vcmp.eq.s32.totalorder %v171, %v168
        %v173 = vsel %vm172, 1, 0
        %v174 = vcvt.s32.f32 %v173
        %v175 = vld [vmem:[%s1] sm:$0xff]
        %v176 = vld [vmem:[%s1 + $0x8] sm:$0xff]
        %v177 = vld [vmem:[%s1 + $0x10] sm:$0xff]
        %v178 = vld [vmem:[%s1 + $0x18] sm:$0xff]
        %v179 = vld [vmem:[%s1 + $0x20] sm:$0xff]
        %v180 = vld [vmem:[%s1 + $0x28] sm:$0xff]
        %v181 = vld [vmem:[%s1 + $0x30] sm:$0xff]
        %v182 = vld [vmem:[%s1 + $0x38] sm:$0xff]
        %vm183 = vcmask 523264
        %v185 = vsel %vm183, %v174, 0
        %187 = vmatprep.subr.mxu0 0.0
        %188 = vmatpush1.msra.mxu0 %v175
        %189 = vmatprep.subr.mxu0 0.0
        %190 = vmatpush1.msra.mxu0 %v176
        %191 = vmatprep.subr.mxu0 0.0
        %192 = vmatpush1.msra.mxu0 %v177
        %193 = vmatprep.subr.mxu0 0.0
        %194 = vmatpush1.msra.mxu0 %v178
        %195 = vmatprep.subr.mxu0 0.0
        %196 = vmatpush1.msra.mxu0 %v179
        %197 = vmatprep.subr.mxu0 0.0
        %198 = vmatpush1.msra.mxu0 %v180
        %199 = vmatprep.subr.mxu0 0.0
        %200 = vmatpush1.msra.mxu0 %v181
        %201 = vmatprep.subr.mxu0 0.0
        %202 = vmatpush1.msra.mxu0 %v182
        %203 = vmatprep.subr.mxu0 0.0
        %204 = vmatpush1.msra.mxu0 0.0
        %205 = vmatprep.subr.mxu0 0.0
        %206 = vmatpush1.msra.mxu0 0.0
        %207 = vmatprep.subr.mxu0 0.0
        %208 = vmatpush1.msra.mxu0 0.0
        %209 = vmatprep.subr.mxu0 0.0
        %210 = vmatpush1.msra.mxu0 0.0
        %211 = vmatprep.subr.mxu0 0.0
        %212 = vmatpush1.msra.mxu0 0.0
        %213 = vmatprep.subr.mxu0 0.0
        %214 = vmatpush1.msra.mxu0 0.0
        %215 = vmatprep.subr.mxu0 0.0
        %216 = vmatpush1.msra.mxu0 0.0
        %217 = vmatprep.subr.mxu0 0.0
        %218 = vmatpush1.msra.mxu0 0.0
        %219 = vmatprep.subr.mxu0 0.0
        %220 = vmatpush1.msra.mxu0 0.0
        %221 = vmatprep.subr.mxu0 0.0
        %222 = vmatpush1.msra.mxu0 0.0
        %223 = vmatprep.subr.mxu0 0.0
        %224 = vmatpush1.msra.mxu0 0.0
        %225 = vmatprep.subr.mxu0 0.0
        %226 = vmatpush1.msra.mxu0 0.0
        %227 = vmatprep.subr.mxu0 0.0
        %228 = vmatpush1.msra.mxu0 0.0
        %229 = vmatprep.subr.mxu0 0.0
        %230 = vmatpush1.msra.mxu0 0.0
        %231 = vmatprep.subr.mxu0 0.0
        %232 = vmatpush1.msra.mxu0 0.0
        %233 = vmatprep.subr.mxu0 0.0
        %234 = vmatpush1.msra.mxu0 0.0
        %235 = vmatprep.subr.mxu0 0.0
        %236 = vmatpush1.msra.mxu0 0.0
        %237 = vmatprep.subr.mxu0 0.0
        %238 = vmatpush1.msra.mxu0 0.0
        %239 = vmatprep.subr.mxu0 0.0
        %240 = vmatpush1.msra.mxu0 0.0
        %241 = vmatprep.subr.mxu0 0.0
        %242 = vmatpush1.msra.mxu0 0.0
        %243 = vmatprep.subr.mxu0 0.0
        %244 = vmatpush1.msra.mxu0 0.0
        %245 = vmatprep.subr.mxu0 0.0
        %246 = vmatpush1.msra.mxu0 0.0
        %247 = vmatprep.subr.mxu0 0.0
        %248 = vmatpush1.msra.mxu0 0.0
        %249 = vmatprep.subr.mxu0 0.0
        %250 = vmatpush1.msra.mxu0 0.0
        %251 = vmatprep.mubr.f32.mxu0 0.0
        %252 = vmatmul.mubr.f32.gmra.mrb[0].mxu0 %v185
        %v253 = vpop.f32.mrb[0].mxu0
        %v254 = vadd.f32 0.0, %v253
        %v255 = vpop.f32.mrb[0].mxu0
        %256 = vdwg.mxu0
        %v257 = vld [vmem:[%s2] sm:$0xff]
        %v258 = vld [vmem:[%s2 + $0x8] sm:$0xff]
        %v259 = vld [vmem:[%s2 + $0x10] sm:$0xff]
        %v260 = vld [vmem:[%s2 + $0x18] sm:$0xff]
        %vm261 = vcmask 261120
        %v263 = vsel %vm261, %v254, 0
        %265 = vmatprep.subr.mxu0 0.0
        %266 = vmatpush1.msra.mxu0 %v257
        %267 = vmatprep.subr.mxu0 0.0
        %268 = vmatpush1.msra.mxu0 %v258
        %269 = vmatprep.subr.mxu0 0.0
        %270 = vmatpush1.msra.mxu0 %v259
        %271 = vmatprep.subr.mxu0 0.0
        %272 = vmatpush1.msra.mxu0 %v260
        %273 = vmatprep.subr.mxu0 0.0
        %274 = vmatpush1.msra.mxu0 0.0
        %275 = vmatprep.subr.mxu0 0.0
        %276 = vmatpush1.msra.mxu0 0.0
        %277 = vmatprep.subr.mxu0 0.0
        %278 = vmatpush1.msra.mxu0 0.0
        %279 = vmatprep.subr.mxu0 0.0
        %280 = vmatpush1.msra.mxu0 0.0
        %281 = vmatprep.subr.mxu0 0.0
        %282 = vmatpush1.msra.mxu0 0.0
        %283 = vmatprep.subr.mxu0 0.0
        %284 = vmatpush1.msra.mxu0 0.0
        %285 = vmatprep.subr.mxu0 0.0
        %286 = vmatpush1.msra.mxu0 0.0
        %287 = vmatprep.subr.mxu0 0.0
        %288 = vmatpush1.msra.mxu0 0.0
        %289 = vmatprep.subr.mxu0 0.0
        %290 = vmatpush1.msra.mxu0 0.0
        %291 = vmatprep.subr.mxu0 0.0
        %292 = vmatpush1.msra.mxu0 0.0
        %293 = vmatprep.subr.mxu0 0.0
        %294 = vmatpush1.msra.mxu0 0.0
        %295 = vmatprep.subr.mxu0 0.0
        %296 = vmatpush1.msra.mxu0 0.0
        %297 = vmatprep.subr.mxu0 0.0
        %298 = vmatpush1.msra.mxu0 0.0
        %299 = vmatprep.subr.mxu0 0.0
        %300 = vmatpush1.msra.mxu0 0.0
        %301 = vmatprep.subr.mxu0 0.0
        %302 = vmatpush1.msra.mxu0 0.0
        %303 = vmatprep.subr.mxu0 0.0
        %304 = vmatpush1.msra.mxu0 0.0
        %305 = vmatprep.subr.mxu0 0.0
        %306 = vmatpush1.msra.mxu0 0.0
        %307 = vmatprep.subr.mxu0 0.0
        %308 = vmatpush1.msra.mxu0 0.0
        %309 = vmatprep.subr.mxu0 0.0
        %310 = vmatpush1.msra.mxu0 0.0
        %311 = vmatprep.subr.mxu0 0.0
        %312 = vmatpush1.msra.mxu0 0.0
        %313 = vmatprep.subr.mxu0 0.0
        %314 = vmatpush1.msra.mxu0 0.0
        %315 = vmatprep.subr.mxu0 0.0
        %316 = vmatpush1.msra.mxu0 0.0
        %317 = vmatprep.subr.mxu0 0.0
        %318 = vmatpush1.msra.mxu0 0.0
        %319 = vmatprep.subr.mxu0 0.0
        %320 = vmatpush1.msra.mxu0 0.0
        %321 = vmatprep.subr.mxu0 0.0
        %322 = vmatpush1.msra.mxu0 0.0
        %323 = vmatprep.subr.mxu0 0.0
        %324 = vmatpush1.msra.mxu0 0.0
        %325 = vmatprep.subr.mxu0 0.0
        %326 = vmatpush1.msra.mxu0 0.0
        %327 = vmatprep.subr.mxu0 0.0
        %328 = vmatpush1.msra.mxu0 0.0
        %329 = vmatprep.mubr.f32.mxu0 0.0
        %330 = vmatmul.mubr.f32.gmra.mrb[0].mxu0 %v263
        %v331 = vpop.f32.mrb[0].mxu0
        %v332 = vadd.f32 0.0, %v331
        %v333 = vpop.f32.mrb[0].mxu0
        %334 = vdwg.mxu0
        %vm335 = vcmask 130048
        %336 = vst.msk [vmem:[%s161] sm:$0xff] %vm335, %v332
        %s337 = sand.u32 %s93, 1
        %s338 = scalar_lea.sflag [#allocation3], %s337
        %s339 = sand.u32 %s93, 1
        %s340 = smul.addr %s339, 8
        %s341 = scalar_lea.vmem [#allocation2], %s340
        // Predicated region
        $region33: #{tpu_custom_call.1} parent=31 // pred_check
          %p342 = pneg %p103
        $region34: #{tpu_custom_call.1} parent=31 // pred_check_branch
          %344 = sbr.rel (%p342) target = $region36
        $region35: #{tpu_custom_call.1} parent=31 // pred_region
          %s346 = ssub.s32 128, 128
          %347 = vsyncadd %s338, %s346
          %s348 = smul.addr %s17, 128
          %s349 = scalar_lea.hbm %s3, %s348
          %s351 = sshll.u32 %s341, 4
          %s352 = int_to_ptr.vmem [resolvable:$true] %s351
          %354 = dma.vmem_to_hbm [thread:$0]  %s352, 128, %s349, %s338
        $region36: #{tpu_custom_call.1} parent=31 // pred_fallthru
          _
      $region32: #{tpu_custom_call.1} parent=5 // pred_fallthru
        _
      %p355 = scmp.le.s32.totalorder 2, %s12
      // Predicated region
      $region37: #{tpu_custom_call.1} parent=5 // pred_check
        %p356 = pneg %p355
      $region38: #{tpu_custom_call.1} parent=5 // pred_check_branch
        %358 = sbr.rel (%p356) target = $region40
      $region39: #{tpu_custom_call.1} parent=5 // pred_region
        %s359 = ssub.s32 %s12, 2
        // Predicated region
        $region41: #{tpu_custom_call.1} parent=39 // pred_check
          %p360 = pneg %p109
        $region42: #{tpu_custom_call.1} parent=39 // pred_check_branch
          %362 = sbr.rel (%p360) target = $region44
        $region43: #{tpu_custom_call.1} parent=39 // pred_region
          %s363 = sand.u32 %s94, 1
          %s364 = scalar_lea.sflag [#allocation3], %s363
          %s365 = sand.u32 %s94, 1
          %s366 = smul.addr %s365, 8
          %s367 = scalar_lea.vmem [#allocation2], %s366
          %368 = dma.done %s364, 128
        $region44: #{tpu_custom_call.1} parent=39 // pred_fallthru
          _
      $region40: #{tpu_custom_call.1} parent=5 // pred_fallthru
        _
    $region6: #{tpu_custom_call.1} parent=1 // loop_footer
      %s16 = sadd.s32 1, %s12
    $region7: #{tpu_custom_call.1} parent=1 // loop_footer_branch
      %11 = sbr.rel target = $region3
    $region8: #{tpu_custom_call.1} parent=1 // loop_exit
      _
    %369 = vsyncpa [#allocation3], 1
    %s370 = scalar_lea.sflag [#allocation3], 1
    %371 = vsyncpa %s370, 1

</llo_original>
